<compile_context>
chip_gen: v7x
topology: tpu7x:2x2x1
jax: 0.10.0
libtpu: 0.0.40
codegen_flags: <defaults>
</compile_context>

<pallas_src>
import functools
import math

import jax
import jax.numpy as jnp
from jax.experimental import pallas as pl
from jax.experimental.pallas import tpu as pltpu

_LANE = 128
_SUB = 8


def _sublane_multiple(dtype):
    """Minimum second-to-last block-dim multiple for a dtype (8/16/32)."""
    itemsize = jnp.dtype(dtype).itemsize
    return max(_SUB, (4 // itemsize) * _SUB)


def _round_up(x, m):
    return ((x + m - 1) // m) * m


def _seg_loss_kernel(yt_ref, yp_ref, acc_ref, *, tile_rows, chunk,
                     binary_targets):
    """Accumulate per-(sample, split) partial sums into a (4, 8, 128) block.

    Slabs: 0 -> sum|t-p|, 1 -> signed BCE sum (negated in wrapper),
           2 -> sum(t+p), 3 -> sum(t*p).
    Grid = (B, splits, NT_inner); axis 2 is the reduction axis and the output
    block is revisited across it (VMEM-resident accumulator).
    """
    t_idx = pl.program_id(2)

    @pl.when(t_idx == 0)
    def _init():
        acc_ref[...] = jnp.zeros_like(acc_ref)

    n_chunks = tile_rows // chunk
    n_fold = chunk // _SUB

    def fold(x):
        # (chunk, 128) -> (8, 128): pure VPU adds over whole vregs, no XLU.
        if n_fold == 1:
            return x
        return jnp.sum(x.reshape(n_fold, _SUB, _LANE), axis=0)

    def body(i, carry):
        s_abs, s_bce, s_sum, s_prod = carry
        start = pl.multiple_of(i * chunk, chunk)
        t = yt_ref[pl.ds(start, chunk), :].astype(jnp.float32)
        p = yp_ref[pl.ds(start, chunk), :].astype(jnp.float32)
        if binary_targets:
            # t in {0,1}: one log per element (halves EUP work).
            bce = jnp.maximum(jnp.log(jnp.where(t > 0.5, p, 1.0 - p)), -100.0)
        else:
            # PyTorch BCE with the log clamp at -100, signed form (no negate).
            log_p = jnp.maximum(jnp.log(p), -100.0)
            log_1mp = jnp.maximum(jnp.log(1.0 - p), -100.0)
            bce = log_1mp + t * (log_p - log_1mp)
        return (s_abs + fold(jnp.abs(t - p)),
                s_bce + fold(bce),
                s_sum + fold(t + p),
                s_prod + fold(t * p))

    zero = jnp.zeros((_SUB, _LANE), jnp.float32)
    s_abs, s_bce, s_sum, s_prod = jax.lax.fori_loop(
        0, n_chunks, body, (zero, zero, zero, zero), unroll=n_chunks <= 8)

    acc_ref[0] += s_abs
    acc_ref[1] += s_bce
    acc_ref[2] += s_sum
    acc_ref[3] += s_prod


def segmentation_loss_pallas(y_true, y_pred, loss_weights=(0.3, 0.5, 0.1, 0.1),
                             tile_rows=4096, binary_targets=False,
                             reduce_splits=None):
    """Forward of segmentation_loss(batch=True) with a Pallas TPU kernel."""
    assert y_true.shape == y_pred.shape
    assert tile_rows > 0
    B = y_true.shape[0]
    M = math.prod(y_true.shape[1:])          # C*H*W per sample
    n_elem = float(B * M)                    # true (unpadded) element count

    # Dtype-aware sublane multiple (f32: 8, bf16: 16, int8/fp8: 32).
    sub_mult = max(_sublane_multiple(y_true.dtype),
                   _sublane_multiple(y_pred.dtype))
    gran = sub_mult * _LANE

    # Row layout: R rows of 128 lanes, R a multiple of the sublane requirement.
    Mp = _round_up(M, gran)
    R = Mp // _LANE

    # Pick TR as a divisor of R so there is NO ragged tile and NO in-kernel
    # mask on the hot path.
    tr_cap = max(sub_mult, (min(tile_rows, R) // sub_mult) * sub_mult)
    TR = sub_mult
    for cand in range(tr_cap, sub_mult - 1, -sub_mult):
        if R % cand == 0:
            TR = cand
            break
    if TR < max(sub_mult, tr_cap // 4):
        # Pathological R (e.g. 8 * large prime): pad rows so a full-size tile
        # divides evenly instead of shrinking TR.  Zero rows contribute 0 to
        # every accumulated term, so the result is unchanged.
        TR = tr_cap
        R = _round_up(R, TR)
        Mp = R * _LANE
    NT = R // TR

    # Inner chunk for the fused fold: <=64 rows, sublane multiple, divides TR.
    chunk = max(sub_mult, (min(64, TR) // sub_mult) * sub_mult)
    while TR % chunk != 0:
        chunk -= sub_mult

    # Split the reduction across a second parallel axis when the batch alone
    # cannot keep both v7x TensorCores busy.
    if reduce_splits is None:
        reduce_splits = 2 if (B == 1 and NT >= 2 and NT % 2 == 0) else 1
    assert NT % reduce_splits == 0
    nt_inner = NT // reduce_splits

    yt = y_true.reshape(B, M)
    yp = y_pred.reshape(B, M)
    if Mp != M:
        yt = jnp.pad(yt, ((0, 0), (0, Mp - M)))
        yp = jnp.pad(yp, ((0, 0), (0, Mp - M)))
    yt = yt.reshape(B, R, _LANE)
    yp = yp.reshape(B, R, _LANE)

    kernel = functools.partial(
        _seg_loss_kernel, tile_rows=TR, chunk=chunk,
        binary_targets=binary_targets)

    in_spec = pl.BlockSpec((None, TR, _LANE),
                           lambda b, c, t: (b, c * nt_inner + t, 0))

    partials = pl.pallas_call(
        kernel,
        out_shape=jax.ShapeDtypeStruct((B, reduce_splits, 4, _SUB, _LANE),
                                       jnp.float32),
        grid=(B, reduce_splits, nt_inner),
        in_specs=[in_spec, in_spec],
        # Same block index across the reduction axis -> the output block is the
        # per-(sample, split) accumulator, VMEM-resident across the t loop.
        out_specs=pl.BlockSpec((None, None, 4, _SUB, _LANE),
                               lambda b, c, t: (b, c, 0, 0, 0)),
        compiler_params=pltpu.CompilerParams(
            dimension_semantics=("parallel", "parallel", "arbitrary"),
            vmem_limit_bytes=32 * 1024 * 1024,
        ),
    )(yt, yp)

    # Tiny epilogue in plain JAX: fold the vreg partials, weighted combine.
    sums = jnp.sum(partials, axis=(1, 3, 4))                      # (B, 4)
    abs_s, bce_s, sum_s, prod_s = (sums[:, i] for i in range(4))
    w = [jnp.float32(x) for x in loss_weights]

    mae = jnp.sum(abs_s) / n_elem                                 # a: L1Loss
    dice = 1.0 - 2.0 * jnp.sum(prod_s) / jnp.sum(sum_s)           # b: soft dice (batch=True)
    bce = -jnp.sum(bce_s) / n_elem                                # c: BCELoss
    iou = 1.0 - jnp.mean(prod_s / (sum_s - prod_s))               # d: IoU loss
    return w[0] * mae + w[1] * dice + w[2] * iou + w[3] * bce


def segmentation_loss_ref(y_true, y_pred, w=(0.3, 0.5, 0.1, 0.1)):
    """Pure-JAX reference matching the PyTorch module semantics."""
    yt = y_true.astype(jnp.float32)
    yp = y_pred.astype(jnp.float32)
    a = jnp.mean(jnp.abs(yt - yp))                                  # L1Loss
    inter = jnp.sum(yt * yp)
    b = 1.0 - 2.0 * inter / (jnp.sum(yt) + jnp.sum(yp))             # soft dice (batch=True)
    logp = jnp.maximum(jnp.log(yp), -100.0)
    log1p = jnp.maximum(jnp.log(1.0 - yp), -100.0)
    c = jnp.mean(-(yt * logp + (1.0 - yt) * log1p))                 # BCELoss
    inter_b = jnp.sum(yp * yt, axis=(1, 2, 3))
    total_b = jnp.sum(yp + yt, axis=(1, 2, 3))
    d = 1.0 - jnp.mean(inter_b / (total_b - inter_b))               # IoU loss
    return w[0] * a + w[1] * b + w[2] * d + w[3] * c


if __name__ == "__main__":
    key = jax.random.PRNGKey(0)
    k1, k2, k3, k4, k5, k6 = jax.random.split(key, 6)

    # 1) Primary small shape (NCHW), default big-tile path (single tile).
    B, C, H, W = 2, 4, 16, 16
    y_pred = jax.nn.sigmoid(jax.random.normal(k1, (B, C, H, W), dtype=jnp.float32))
    y_true = (jax.random.uniform(k2, (B, C, H, W)) > 0.5).astype(jnp.float32)
    loss = jax.block_until_ready(segmentation_loss_pallas(y_true, y_pred))
    ref = segmentation_loss_ref(y_true, y_pred)
    assert jnp.allclose(loss, ref, rtol=1e-4, atol=1e-5), (loss, ref)

    # 2) Multi-tile reduction (accumulator revisited across t) + single-log
    #    BCE path (y_true is a binary mask here, so it is exact).
    B2, C2, H2, W2 = 2, 3, 32, 32            # M = 3072 -> R = 24, tile_rows=16 -> TR=8, NT=3
    y_pred2 = jax.nn.sigmoid(jax.random.normal(k3, (B2, C2, H2, W2), dtype=jnp.float32))
    y_true2 = (jax.random.uniform(k4, (B2, C2, H2, W2)) > 0.5).astype(jnp.float32)
    loss2 = jax.block_until_ready(
        segmentation_loss_pallas(y_true2, y_pred2, tile_rows=16,
                                 binary_targets=True))
    ref2 = segmentation_loss_ref(y_true2, y_pred2)
    assert jnp.allclose(loss2, ref2, rtol=1e-4, atol=1e-5), (loss2, ref2)

    # 3) B=1: exercises the 2-way reduction split (both v7x TCs) and the
    #    multi-chunk fused inner loop (TR=128 -> chunk=64, n_chunks=2).
    B3, C3, H3, W3 = 1, 2, 128, 128          # M = 32768 -> R = 256, TR=128, NT=2, splits=2
    y_pred3 = jax.nn.sigmoid(jax.random.normal(k5, (B3, C3, H3, W3), dtype=jnp.float32))
    y_true3 = (jax.random.uniform(k6, (B3, C3, H3, W3)) > 0.5).astype(jnp.float32)
    loss3 = jax.block_until_ready(
        segmentation_loss_pallas(y_true3, y_pred3, tile_rows=128))
    ref3 = segmentation_loss_ref(y_true3, y_pred3)
    assert jnp.allclose(loss3, ref3, rtol=1e-4, atol=1e-5), (loss3, ref3)

    # 4) bf16 inputs (halved HBM traffic path; sublane multiple = 16).
    #    Reference sees the same bf16-quantized data, so agreement is tight.
    yt_b = y_true.astype(jnp.bfloat16)
    yp_b = y_pred.astype(jnp.bfloat16)
    loss4 = jax.block_until_ready(segmentation_loss_pallas(yt_b, yp_b))
    ref4 = segmentation_loss_ref(yt_b, yp_b)
    assert jnp.allclose(loss4, ref4, rtol=1e-4, atol=1e-5), (loss4, ref4)

    print("KERNEL_OK")
</pallas_src>

<mosaic_0001>
module attributes {stable_mosaic.version = 11 : i64} {
  func.func @_seg_loss_kernel(%arg0: i32, %arg1: i32, %arg2: i32, %arg3: memref<1x8x128xf32, #tpu.memory_space<vmem>>, %arg4: memref<1x8x128xf32, #tpu.memory_space<vmem>>, %arg5: memref<1x1x4x8x128xf32, #tpu.memory_space<vmem>>) attributes {dimension_semantics = [#tpu.dimension_semantics<parallel>, #tpu.dimension_semantics<parallel>, #tpu.dimension_semantics<arbitrary>], iteration_bounds = array<i64: 2, 1, 1>, scalar_prefetch = 0 : i64, scratch_operands = 0 : i64, tpu.core_type = #tpu.core_type<tc>, window_params = [{transform_indices = @transform_0, window_bounds = array<i64: 1, 8, 128>}, {transform_indices = @transform_1, window_bounds = array<i64: 1, 8, 128>}, {transform_indices = @transform_2, window_bounds = array<i64: 1, 1, 4, 8, 128>}]} {
    %c0_i32 = arith.constant 0 : i32
    %0 = arith.cmpi eq, %arg2, %c0_i32 : i32
    %1 = arith.extui %0 : i1 to i32
    %c0_i32_0 = arith.constant 0 : i32
    %2 = arith.cmpi ne, %1, %c0_i32_0 : i32
    scf.if %2 {
      %cst_45 = arith.constant 0.000000e+00 : f32
      %55 = vector.broadcast %cst_45 : f32 to vector<4x8x128xf32>
      %c0_46 = arith.constant 0 : index
      %c0_47 = arith.constant 0 : index
      %c0_48 = arith.constant 0 : index
      %c0_49 = arith.constant 0 : index
      %c0_50 = arith.constant 0 : index
      %56 = vector.load %arg5[%c0_46, %c0_47, %c0_48, %c0_49, %c0_50] : memref<1x1x4x8x128xf32, #tpu.memory_space<vmem>>, vector<1x1x4x8x128xf32>
      %57 = vector.shape_cast %56 : vector<1x1x4x8x128xf32> to vector<4x8x128xf32>
      %58 = vector.shape_cast %55 : vector<4x8x128xf32> to vector<1x1x4x8x128xf32>
      tpu.vector_store %arg5[%c0_46, %c0_47, %c0_48, %c0_49, %c0_50], %58 {strides = array<i32>} : memref<1x1x4x8x128xf32, #tpu.memory_space<vmem>>, vector<1x1x4x8x128xf32>,
    } else {
    }
    %cst = arith.constant 0.000000e+00 : f32
    %3 = vector.broadcast %cst : f32 to vector<8x128xf32>
    %c0_i32_1 = arith.constant 0 : i32
    %c8_i32 = arith.constant 8 : i32
    %4 = arith.muli %c0_i32_1, %c8_i32 : i32
    %5 = tpu.assume_multiple %4, 8 : i32
    %c0 = arith.constant 0 : index
    %6 = arith.index_cast %5 : i32 to index
    %c0_2 = arith.constant 0 : index
    %7 = vector.load %arg3[%c0, %6, %c0_2] : memref<1x8x128xf32, #tpu.memory_space<vmem>>, vector<1x8x128xf32>
    %8 = vector.shape_cast %7 : vector<1x8x128xf32> to vector<8x128xf32>
    %c0_3 = arith.constant 0 : index
    %9 = arith.index_cast %5 : i32 to index
    %c0_4 = arith.constant 0 : index
    %10 = vector.load %arg4[%c0_3, %9, %c0_4] : memref<1x8x128xf32, #tpu.memory_space<vmem>>, vector<1x8x128xf32>
    %11 = vector.shape_cast %10 : vector<1x8x128xf32> to vector<8x128xf32>
    %12 = math.log %11 : vector<8x128xf32>
    %cst_5 = arith.constant -1.000000e+02 : f32
    %13 = vector.broadcast %cst_5 : f32 to vector<8x128xf32>
    %14 = arith.maximumf %12, %13 : vector<8x128xf32>
    %cst_6 = arith.constant 1.000000e+00 : f32
    %15 = vector.broadcast %cst_6 : f32 to vector<8x128xf32>
    %16 = arith.subf %15, %11 : vector<8x128xf32>
    %17 = math.log %16 : vector<8x128xf32>
    %cst_7 = arith.constant -1.000000e+02 : f32
    %18 = vector.broadcast %cst_7 : f32 to vector<8x128xf32>
    %19 = arith.maximumf %17, %18 : vector<8x128xf32>
    %20 = arith.subf %14, %19 : vector<8x128xf32>
    %21 = arith.mulf %8, %20 : vector<8x128xf32>
    %22 = arith.addf %19, %21 : vector<8x128xf32>
    %23 = arith.subf %8, %11 : vector<8x128xf32>
    %24 = math.absf %23 : vector<8x128xf32>
    %25 = arith.addf %3, %24 : vector<8x128xf32>
    %26 = arith.addf %3, %22 : vector<8x128xf32>
    %27 = arith.addf %8, %11 : vector<8x128xf32>
    %28 = arith.addf %3, %27 : vector<8x128xf32>
    %29 = arith.mulf %8, %11 : vector<8x128xf32>
    %30 = arith.addf %3, %29 : vector<8x128xf32>
    %c1_i32 = arith.constant 1 : i32
    %c0_8 = arith.constant 0 : index
    %c0_9 = arith.constant 0 : index
    %c0_10 = arith.constant 0 : index
    %c0_11 = arith.constant 0 : index
    %c0_12 = arith.constant 0 : index
    %31 = vector.load %arg5[%c0_8, %c0_9, %c0_10, %c0_11, %c0_12] : memref<1x1x4x8x128xf32, #tpu.memory_space<vmem>>, vector<1x1x1x8x128xf32>
    %32 = vector.shape_cast %31 : vector<1x1x1x8x128xf32> to vector<8x128xf32>
    %33 = arith.addf %32, %25 : vector<8x128xf32>
    %c0_13 = arith.constant 0 : index
    %c0_14 = arith.constant 0 : index
    %c0_15 = arith.constant 0 : index
    %c0_16 = arith.constant 0 : index
    %c0_17 = arith.constant 0 : index
    %34 = vector.load %arg5[%c0_13, %c0_14, %c0_15, %c0_16, %c0_17] : memref<1x1x4x8x128xf32, #tpu.memory_space<vmem>>, vector<1x1x1x8x128xf32>
    %35 = vector.shape_cast %34 : vector<1x1x1x8x128xf32> to vector<8x128xf32>
    %36 = vector.shape_cast %33 : vector<8x128xf32> to vector<1x1x1x8x128xf32>
    tpu.vector_store %arg5[%c0_13, %c0_14, %c0_15, %c0_16, %c0_17], %36 {strides = array<i32>} : memref<1x1x4x8x128xf32, #tpu.memory_space<vmem>>, vector<1x1x1x8x128xf32>,
    %c0_18 = arith.constant 0 : index
    %c0_19 = arith.constant 0 : index
    %c1 = arith.constant 1 : index
    %c0_20 = arith.constant 0 : index
    %c0_21 = arith.constant 0 : index
    %37 = vector.load %arg5[%c0_18, %c0_19, %c1, %c0_20, %c0_21] : memref<1x1x4x8x128xf32, #tpu.memory_space<vmem>>, vector<1x1x1x8x128xf32>
    %38 = vector.shape_cast %37 : vector<1x1x1x8x128xf32> to vector<8x128xf32>
    %39 = arith.addf %38, %26 : vector<8x128xf32>
    %c0_22 = arith.constant 0 : index
    %c0_23 = arith.constant 0 : index
    %c1_24 = arith.constant 1 : index
    %c0_25 = arith.constant 0 : index
    %c0_26 = arith.constant 0 : index
    %40 = vector.load %arg5[%c0_22, %c0_23, %c1_24, %c0_25, %c0_26] : memref<1x1x4x8x128xf32, #tpu.memory_space<vmem>>, vector<1x1x1x8x128xf32>
    %41 = vector.shape_cast %40 : vector<1x1x1x8x128xf32> to vector<8x128xf32>
    %42 = vector.shape_cast %39 : vector<8x128xf32> to vector<1x1x1x8x128xf32>
    tpu.vector_store %arg5[%c0_22, %c0_23, %c1_24, %c0_25, %c0_26], %42 {strides = array<i32>} : memref<1x1x4x8x128xf32, #tpu.memory_space<vmem>>, vector<1x1x1x8x128xf32>,
    %c0_27 = arith.constant 0 : index
    %c0_28 = arith.constant 0 : index
    %c2 = arith.constant 2 : index
    %c0_29 = arith.constant 0 : index
    %c0_30 = arith.constant 0 : index
    %43 = vector.load %arg5[%c0_27, %c0_28, %c2, %c0_29, %c0_30] : memref<1x1x4x8x128xf32, #tpu.memory_space<vmem>>, vector<1x1x1x8x128xf32>
    %44 = vector.shape_cast %43 : vector<1x1x1x8x128xf32> to vector<8x128xf32>
    %45 = arith.addf %44, %28 : vector<8x128xf32>
    %c0_31 = arith.constant 0 : index
    %c0_32 = arith.constant 0 : index
    %c2_33 = arith.constant 2 : index
    %c0_34 = arith.constant 0 : index
    %c0_35 = arith.constant 0 : index
    %46 = vector.load %arg5[%c0_31, %c0_32, %c2_33, %c0_34, %c0_35] : memref<1x1x4x8x128xf32, #tpu.memory_space<vmem>>, vector<1x1x1x8x128xf32>
    %47 = vector.shape_cast %46 : vector<1x1x1x8x128xf32> to vector<8x128xf32>
    %48 = vector.shape_cast %45 : vector<8x128xf32> to vector<1x1x1x8x128xf32>
    tpu.vector_store %arg5[%c0_31, %c0_32, %c2_33, %c0_34, %c0_35], %48 {strides = array<i32>} : memref<1x1x4x8x128xf32, #tpu.memory_space<vmem>>, vector<1x1x1x8x128xf32>,
    %c0_36 = arith.constant 0 : index
    %c0_37 = arith.constant 0 : index
    %c3 = arith.constant 3 : index
    %c0_38 = arith.constant 0 : index
    %c0_39 = arith.constant 0 : index
    %49 = vector.load %arg5[%c0_36, %c0_37, %c3, %c0_38, %c0_39] : memref<1x1x4x8x128xf32, #tpu.memory_space<vmem>>, vector<1x1x1x8x128xf32>
    %50 = vector.shape_cast %49 : vector<1x1x1x8x128xf32> to vector<8x128xf32>
    %51 = arith.addf %50, %30 : vector<8x128xf32>
    %c0_40 = arith.constant 0 : index
    %c0_41 = arith.constant 0 : index
    %c3_42 = arith.constant 3 : index
    %c0_43 = arith.constant 0 : index
    %c0_44 = arith.constant 0 : index
    %52 = vector.load %arg5[%c0_40, %c0_41, %c3_42, %c0_43, %c0_44] : memref<1x1x4x8x128xf32, #tpu.memory_space<vmem>>, vector<1x1x1x8x128xf32>
    %53 = vector.shape_cast %52 : vector<1x1x1x8x128xf32> to vector<8x128xf32>
    %54 = vector.shape_cast %51 : vector<8x128xf32> to vector<1x1x1x8x128xf32>
    tpu.vector_store %arg5[%c0_40, %c0_41, %c3_42, %c0_43, %c0_44], %54 {strides = array<i32>} : memref<1x1x4x8x128xf32, #tpu.memory_space<vmem>>, vector<1x1x1x8x128xf32>,
    return
  }
  func.func @transform_0(%arg0: i32, %arg1: i32, %arg2: i32) -> (i32, i32, i32) {
    %c1_i32 = arith.constant 1 : i32
    %0 = arith.muli %arg1, %c1_i32 : i32
    %1 = arith.addi %0, %arg2 : i32
    %c0_i32 = arith.constant 0 : i32
    %c0_i32_0 = arith.constant 0 : i32
    return %arg0, %1, %c0_i32 : i32, i32, i32
  }
  func.func @transform_1(%arg0: i32, %arg1: i32, %arg2: i32) -> (i32, i32, i32) {
    %c1_i32 = arith.constant 1 : i32
    %0 = arith.muli %arg1, %c1_i32 : i32
    %1 = arith.addi %0, %arg2 : i32
    %c0_i32 = arith.constant 0 : i32
    %c0_i32_0 = arith.constant 0 : i32
    return %arg0, %1, %c0_i32 : i32, i32, i32
  }
  func.func @transform_2(%arg0: i32, %arg1: i32, %arg2: i32) -> (i32, i32, i32, i32, i32) {
    %c0_i32 = arith.constant 0 : i32
    %c0_i32_0 = arith.constant 0 : i32
    %c0_i32_1 = arith.constant 0 : i32
    %c0_i32_2 = arith.constant 0 : i32
    return %arg0, %arg1, %c0_i32, %c0_i32_0, %c0_i32_1 : i32, i32, i32, i32, i32
  }
}

</mosaic_0001>

<llo_original>
// kernel: tpu_custom_call.1
$region0: #{tpu_custom_call.1}
  #allocation0 [shape = 'u32[]', space=smem, size = 0x4, offset = 0x4, fixed_abs, tag = 'smem constant byte address 0x4 - core index']
  #allocation1 [shape = 'u32[144,128]{1,0:T(1,128)}', space=vmem, size = 0x12000, scoped, tag = 'internal scratch']
  %s0 = inlined_call_operand.hbm [shape: f32[2,8,128], index: 0, kind: input, shape index: {}]
  %s1 = inlined_call_operand.hbm [shape: f32[2,8,128], index: 1, kind: input, shape index: {}]
  %s2 = inlined_call_operand.hbm [shape: f32[2,1,4,8,128], index: 2, kind: output, shape index: {}]
  %s3 = sld [smem:[#allocation0]]
  $region53: #{tpu_custom_call.1} parent=0
    _
  %s5 = ssub.s32 1, %s3
  %s6 = scalar_select 0, %s5, %s3
  $region1: #{tpu_custom_call.1} parent=0
    #allocation2 [shape = 'u8[8192]{0}', space=vmem, size = 0x2000, scoped, tag = 'input window, operand 0']
    #allocation3 [shape = 's32[2]{0}', space=sflag, size = 0x8, scoped, tag = 'scoped memory for tpu_custom_call.1']
    #allocation4 [shape = 's32[2]{0}', space=sflag, size = 0x8, scoped, tag = 'scoped memory for tpu_custom_call.1']
    #allocation5 [shape = 'u8[8192]{0}', space=vmem, size = 0x2000, scoped, tag = 'input window, operand 1']
    #allocation6 [shape = 's32[2]{0}', space=sflag, size = 0x8, scoped, tag = 'scoped memory for tpu_custom_call.1']
    #allocation7 [shape = 'u8[32768]{0}', space=vmem, size = 0x8000, scoped, tag = 'output window, operand 0']
    %7 = vsyncpa [#allocation3], 0
    %s8 = scalar_lea.sflag [#allocation3], 1
    %9 = vsyncpa %s8, 0
    %10 = vsyncpa [#allocation6], 0
    %s11 = scalar_lea.sflag [#allocation6], 1
    %12 = vsyncpa %s11, 0
    %13 = vsyncpa [#allocation4], 0
    %s14 = scalar_lea.sflag [#allocation4], 1
    %15 = vsyncpa %s14, 0
    loop: start=0, step=1, limit=4
    $region2: #{tpu_custom_call.1} parent=1 // loop_pre_header
      _
    $region3: #{tpu_custom_call.1} parent=1 // loop_header
      %s17 = sphi 0, %s21
      %p18 = scmp.ge.s32.totalorder %s17, 4
      %s24 = sphi 0, %s43
      %s25 = sphi 0, %s39
      %s26 = sphi 0, %s35
      %s27 = sphi 0, %s24
      %s28 = sphi 0, %s25
      %s29 = sphi 0, %s26
      %s30 = sphi 0, %s27
      %s31 = sphi 0, %s28
      %s32 = sphi 0, %s29
      %s50 = sphi 0, %s52
      %s53 = sphi 0, %s50
      %s54 = sphi 0, %s53
      %s70 = sphi 0, %s54
      %s80 = sphi 0, %s82
      %s83 = sphi 0, %s80
      %s84 = sphi 0, %s83
      %s100 = sphi 0, %s84
      %s108 = sphi 0, %s110
      %s111 = sphi 0, %s108
      %s112 = sphi 0, %s111
      %s128 = sphi 0, %s112
    $region4: #{tpu_custom_call.1} parent=1 // loop_header_branch
      %20 = sbr.rel (%p18) target = $region8
    $region5: #{tpu_custom_call.1} parent=1 // loop_body
      %s22 = ssub.s32 %s17, 1
      %s23 = ssub.s32 %s17, 2
      %s33 = sadd.s32 1, %s26
      %p34 = scmp.ge.s32.totalorder %s33, 1
      %s35 = scalar_select %p34, 0, %s33
      %s36 = sadd.s32 1, %s25
      %s37 = scalar_select %p34, %s36, %s25
      %p38 = scmp.ge.s32.totalorder %s37, 1
      %s39 = scalar_select %p38, 0, %s37
      %s40 = sadd.s32 1, %s24
      %s41 = scalar_select %p38, %s40, %s24
      %p42 = scmp.ge.s32.totalorder %s41, 2
      %s43 = scalar_select %p42, 0, %s41
      %s44 = sadd.s32 %s25, %s26
      %s45 = sadd.s32 %s39, %s35
      %s46 = ssub.s32 %s24, %s43
      %s47 = ssub.s32 %s44, %s45
      %s48 = sor.u32 %s46, %s47
      %p49 = scmp.eq.s32.totalorder %s48, 0
      %s51 = sadd.s32 %s50, 1
      %s52 = scalar_select %p49, %s50, %s51
      %p55 = pneg %p49
      %p56 = scmp.eq.s32.totalorder %s17, 1
      %p57 = por %p55, %p56
      %p58 = scmp.ne.s32.totalorder %s50, %s53
      %p59 = scmp.eq.s32.totalorder %s17, 0
      %p60 = por %p58, %p59
      %p61 = scmp.ne.s32.totalorder %s50, %s53
      %p62 = scmp.eq.s32.totalorder %s22, 1
      %p63 = por %p61, %p62
      %p64 = scmp.ne.s32.totalorder %s53, %s54
      %p65 = scmp.eq.s32.totalorder %s22, 0
      %p66 = por %p64, %p65
      %p67 = scmp.ne.s32.totalorder %s53, %s54
      %p68 = scmp.eq.s32.totalorder %s23, 1
      %p69 = por %p67, %p68
      %p71 = scmp.ne.s32.totalorder %s54, %s70
      %p72 = scmp.eq.s32.totalorder %s23, 0
      %p73 = por %p71, %p72
      %s74 = sadd.s32 %s25, %s26
      %s75 = sadd.s32 %s39, %s35
      %s76 = ssub.s32 %s24, %s43
      %s77 = ssub.s32 %s74, %s75
      %s78 = sor.u32 %s76, %s77
      %p79 = scmp.eq.s32.totalorder %s78, 0
      %s81 = sadd.s32 %s80, 1
      %s82 = scalar_select %p79, %s80, %s81
      %p85 = pneg %p79
      %p86 = scmp.eq.s32.totalorder %s17, 1
      %p87 = por %p85, %p86
      %p88 = scmp.ne.s32.totalorder %s80, %s83
      %p89 = scmp.eq.s32.totalorder %s17, 0
      %p90 = por %p88, %p89
      %p91 = scmp.ne.s32.totalorder %s80, %s83
      %p92 = scmp.eq.s32.totalorder %s22, 1
      %p93 = por %p91, %p92
      %p94 = scmp.ne.s32.totalorder %s83, %s84
      %p95 = scmp.eq.s32.totalorder %s22, 0
      %p96 = por %p94, %p95
      %p97 = scmp.ne.s32.totalorder %s83, %s84
      %p98 = scmp.eq.s32.totalorder %s23, 1
      %p99 = por %p97, %p98
      %p101 = scmp.ne.s32.totalorder %s84, %s100
      %p102 = scmp.eq.s32.totalorder %s23, 0
      %p103 = por %p101, %p102
      %s104 = ssub.s32 %s24, %s43
      %s105 = ssub.s32 %s25, %s39
      %s106 = sor.u32 %s104, %s105
      %p107 = scmp.eq.s32.totalorder %s106, 0
      %s109 = sadd.s32 %s108, 1
      %s110 = scalar_select %p107, %s108, %s109
      %p113 = pneg %p107
      %p114 = scmp.eq.s32.totalorder %s17, 1
      %p115 = por %p113, %p114
      %p116 = scmp.ne.s32.totalorder %s108, %s111
      %p117 = scmp.eq.s32.totalorder %s17, 0
      %p118 = por %p116, %p117
      %p119 = scmp.ne.s32.totalorder %s108, %s111
      %p120 = scmp.eq.s32.totalorder %s22, 1
      %p121 = por %p119, %p120
      %p122 = scmp.ne.s32.totalorder %s111, %s112
      %p123 = scmp.eq.s32.totalorder %s22, 0
      %p124 = por %p122, %p123
      %p125 = scmp.ne.s32.totalorder %s111, %s112
      %p126 = scmp.eq.s32.totalorder %s23, 1
      %p127 = por %p125, %p126
      %p129 = scmp.ne.s32.totalorder %s112, %s128
      %p130 = scmp.eq.s32.totalorder %s23, 0
      %p131 = por %p129, %p130
      %p132 = scmp.le.s32.totalorder 1, %s17
      %p133 = scmp.lt.s32.totalorder %s17, 3
      %p134 = pnand %p132, %p133
      %p135 = pneg %p134
      // Predicated region
      $region9: #{tpu_custom_call.1} parent=5 // pred_check
        _
      $region10: #{tpu_custom_call.1} parent=5 // pred_check_branch
        %137 = sbr.rel (%p134) target = $region12
      $region11: #{tpu_custom_call.1} parent=5 // pred_region
        %s138 = ssub.s32 %s17, 1
      $region12: #{tpu_custom_call.1} parent=5 // pred_fallthru
        _
      %p139 = scmp.lt.s32.totalorder %s17, 2
      // Predicated region
      $region13: #{tpu_custom_call.1} parent=5 // pred_check
        %p140 = pneg %p139
      $region14: #{tpu_custom_call.1} parent=5 // pred_check_branch
        %142 = sbr.rel (%p140) target = $region16
      $region15: #{tpu_custom_call.1} parent=5 // pred_region
        // Predicated region
        $region17: #{tpu_custom_call.1} parent=15 // pred_check
          %p143 = pneg %p60
        $region18: #{tpu_custom_call.1} parent=15 // pred_check_branch
          %145 = sbr.rel (%p143) target = $region20
        $region19: #{tpu_custom_call.1} parent=15 // pred_region
          %s146 = sand.u32 %s50, 1
          %s147 = scalar_lea.sflag [#allocation3], %s146
          %s148 = sand.u32 %s50, 1
          %s149 = smul.addr %s148, 8
          %s150 = scalar_lea.vmem [#allocation2], %s149
          %s151 = sadd.s32 %s25, %s26
          %s153 = ssub.s32 128, 128
          %154 = vsyncadd %s147, %s153
          %s155 = sadd.s32 %s151, %s24
          %s156 = smul.addr %s155, 128
          %s157 = scalar_lea.hbm %s0, %s156
          %s159 = sshll.u32 %s150, 4
          %s160 = int_to_ptr.vmem [resolvable:$true] %s159
          %162 = dma.hbm_to_vmem [thread:$0]  %s157, 128, %s160, %s147
        $region20: #{tpu_custom_call.1} parent=15 // pred_fallthru
          _
        // Predicated region
        $region21: #{tpu_custom_call.1} parent=15 // pred_check
          %p163 = pneg %p90
        $region22: #{tpu_custom_call.1} parent=15 // pred_check_branch
          %165 = sbr.rel (%p163) target = $region24
        $region23: #{tpu_custom_call.1} parent=15 // pred_region
          %s166 = sand.u32 %s80, 1
          %s167 = scalar_lea.sflag [#allocation6], %s166
          %s168 = sand.u32 %s80, 1
          %s169 = smul.addr %s168, 8
          %s170 = scalar_lea.vmem [#allocation5], %s169
          %s171 = sadd.s32 %s25, %s26
          %s173 = ssub.s32 128, 128
          %174 = vsyncadd %s167, %s173
          %s175 = sadd.s32 %s171, %s24
          %s176 = smul.addr %s175, 128
          %s177 = scalar_lea.hbm %s1, %s176
          %s179 = sshll.u32 %s170, 4
          %s180 = int_to_ptr.vmem [resolvable:$true] %s179
          %182 = dma.hbm_to_vmem [thread:$0]  %s177, 128, %s180, %s167
        $region24: #{tpu_custom_call.1} parent=15 // pred_fallthru
          _
      $region16: #{tpu_custom_call.1} parent=5 // pred_fallthru
        _
      %p183 = scmp.le.s32.totalorder 1, %s17
      %p184 = scmp.lt.s32.totalorder %s17, 3
      %p185 = pnand %p183, %p184
      %p186 = pneg %p185
      // Predicated region
      $region25: #{tpu_custom_call.1} parent=5 // pred_check
        _
      $region26: #{tpu_custom_call.1} parent=5 // pred_check_branch
        %188 = sbr.rel (%p185) target = $region28
      $region27: #{tpu_custom_call.1} parent=5 // pred_region
        %s189 = ssub.s32 %s17, 1
        %s190 = sand.u32 %s53, 1
        %s191 = scalar_lea.sflag [#allocation3], %s190
        %s192 = sand.u32 %s53, 1
        %s193 = smul.addr %s192, 8
        %s194 = scalar_lea.vmem [#allocation2], %s193
        // Predicated region
        $region29: #{tpu_custom_call.1} parent=27 // pred_check
          %p195 = pneg %p66
        $region30: #{tpu_custom_call.1} parent=27 // pred_check_branch
          %197 = sbr.rel (%p195) target = $region32
        $region31: #{tpu_custom_call.1} parent=27 // pred_region
          %198 = dma.done %s191, 128
        $region32: #{tpu_custom_call.1} parent=27 // pred_fallthru
          _
        %s199 = sand.u32 %s83, 1
        %s200 = scalar_lea.sflag [#allocation6], %s199
        %s201 = sand.u32 %s83, 1
        %s202 = smul.addr %s201, 8
        %s203 = scalar_lea.vmem [#allocation5], %s202
        // Predicated region
        $region33: #{tpu_custom_call.1} parent=27 // pred_check
          %p204 = pneg %p96
        $region34: #{tpu_custom_call.1} parent=27 // pred_check_branch
          %206 = sbr.rel (%p204) target = $region36
        $region35: #{tpu_custom_call.1} parent=27 // pred_region
          %207 = dma.done %s200, 128
        $region36: #{tpu_custom_call.1} parent=27 // pred_fallthru
          _
        %s208 = sand.u32 %s53, 1
        %s209 = scalar_lea.sflag [#allocation3], %s208
        %s210 = sand.u32 %s53, 1
        %s211 = smul.addr %s210, 8
        %s212 = scalar_lea.vmem [#allocation2], %s211
        %p213 = pneg %p66
        %p214 = pneg %p63
        %s215 = sand.u32 %s83, 1
        %s216 = scalar_lea.sflag [#allocation6], %s215
        %s217 = sand.u32 %s83, 1
        %s218 = smul.addr %s217, 8
        %s219 = scalar_lea.vmem [#allocation5], %s218
        %p220 = pneg %p96
        %p221 = pneg %p93
        %p222 = pneg %p124
        %p223 = pneg %p121
        %s224 = sand.u32 %s111, 1
        %s225 = scalar_lea.sflag [#allocation4], %s224
        %s226 = sand.u32 %s111, 1
        %s227 = smul.addr %s226, 32
        %s228 = scalar_lea.vmem [#allocation7], %s227
        %s229 = sadd.s32 %s28, %s29
        %s230 = sadd.s32 %s28, %s29
        %p231 = scmp.eq.s32.totalorder %s29, 0
        // Predicated region
        $region37: #{tpu_custom_call.1} parent=27 // pred_check
          %p232 = pneg %p231
        $region38: #{tpu_custom_call.1} parent=27 // pred_check_branch
          %234 = sbr.rel (%p232) target = $region40
        $region39: #{tpu_custom_call.1} parent=27 // pred_region
          %235 = vst [vmem:[%s228] sm:$0xff] 0.0
          %236 = vst [vmem:[%s228 + $0x8] sm:$0xff] 0.0
          %237 = vst [vmem:[%s228 + $0x10] sm:$0xff] 0.0
          %238 = vst [vmem:[%s228 + $0x18] sm:$0xff] 0.0
        $region40: #{tpu_custom_call.1} parent=27 // pred_fallthru
          _
        %v239 = vld [vmem:[%s194] sm:$0xff]
        %v240 = vld [vmem:[%s203] sm:$0xff]
        %v241 = vlog2.pop %v240
        %v242 = vmul.f32 %v241, 0.6931472
        %v243 = vmax.f32 %v242, -100.0
        %v244 = vsub.f32 1.0, %v240
        %v245 = vlog2.pop %v244
        %v246 = vmul.f32 %v245, 0.6931472
        %v247 = vmax.f32 %v246, -100.0
        %v248 = vsub.f32 %v243, %v247
        %v249 = vmul.f32 %v239, %v248
        %v250 = vadd.f32 %v247, %v249
        %v251 = vsub.f32 %v239, %v240
        %v252 = vand.u32 2147483647, %v251
        %v253 = vadd.f32 %v252, 0.0
        %v254 = vadd.f32 %v250, 0.0
        %v255 = vadd.f32 %v239, %v240
        %v256 = vadd.f32 %v255, 0.0
        %v257 = vmul.f32 %v239, %v240
        %v258 = vadd.f32 %v257, 0.0
        %v259 = vld [vmem:[%s228] sm:$0xff]
        %v260 = vadd.f32 %v259, %v253
        %261 = vst [vmem:[%s228] sm:$0xff] %v260
        %s262 = scalar_lea.vmem %s228, 8 [#allocation7]
        %v263 = vld [vmem:[%s262] sm:$0xff]
        %v264 = vadd.f32 %v263, %v254
        %265 = vst [vmem:[%s262] sm:$0xff] %v264
        %s266 = scalar_lea.vmem %s228, 16 [#allocation7]
        %v267 = vld [vmem:[%s266] sm:$0xff]
        %v268 = vadd.f32 %v267, %v256
        %269 = vst [vmem:[%s266] sm:$0xff] %v268
        %s270 = scalar_lea.vmem %s228, 24 [#allocation7]
        %v271 = vld [vmem:[%s270] sm:$0xff]
        %v272 = vadd.f32 %v271, %v258
        %273 = vst [vmem:[%s270] sm:$0xff] %v272
        %s274 = sand.u32 %s111, 1
        %s275 = scalar_lea.sflag [#allocation4], %s274
        %s276 = sand.u32 %s111, 1
        %s277 = smul.addr %s276, 32
        %s278 = scalar_lea.vmem [#allocation7], %s277
        // Predicated region
        $region41: #{tpu_custom_call.1} parent=27 // pred_check
          %p279 = pneg %p121
        $region42: #{tpu_custom_call.1} parent=27 // pred_check_branch
          %281 = sbr.rel (%p279) target = $region44
        $region43: #{tpu_custom_call.1} parent=27 // pred_region
          %s283 = ssub.s32 512, 512
          %284 = vsyncadd %s275, %s283
          %s285 = smul.addr %s28, 4
          %s286 = smul.addr %s27, 4
          %s287 = sadd.s32 %s285, %s286
          %s288 = smul.addr %s287, 128
          %s289 = scalar_lea.hbm %s2, %s288
          %s290 = sshll.u32 %s278, 4
          %s291 = int_to_ptr.vmem [resolvable:$true] %s290
          %296 = dma.vmem_to_hbm [thread:$0]  %s291, 512, %s289, %s275, 128, 128, 8
        $region44: #{tpu_custom_call.1} parent=27 // pred_fallthru
          _
      $region28: #{tpu_custom_call.1} parent=5 // pred_fallthru
        _
      %p297 = scmp.le.s32.totalorder 2, %s17
      // Predicated region
      $region45: #{tpu_custom_call.1} parent=5 // pred_check
        %p298 = pneg %p297
      $region46: #{tpu_custom_call.1} parent=5 // pred_check_branch
        %300 = sbr.rel (%p298) target = $region48
      $region47: #{tpu_custom_call.1} parent=5 // pred_region
        %s301 = ssub.s32 %s17, 2
        // Predicated region
        $region49: #{tpu_custom_call.1} parent=47 // pred_check
          %p302 = pneg %p127
        $region50: #{tpu_custom_call.1} parent=47 // pred_check_branch
          %304 = sbr.rel (%p302) target = $region52
        $region51: #{tpu_custom_call.1} parent=47 // pred_region
          %s305 = sand.u32 %s112, 1
          %s306 = scalar_lea.sflag [#allocation4], %s305
          %s307 = sand.u32 %s112, 1
          %s308 = smul.addr %s307, 32
          %s309 = scalar_lea.vmem [#allocation7], %s308
          %310 = dma.done %s306, 512
        $region52: #{tpu_custom_call.1} parent=47 // pred_fallthru
          _
      $region48: #{tpu_custom_call.1} parent=5 // pred_fallthru
        _
    $region6: #{tpu_custom_call.1} parent=1 // loop_footer
      %s21 = sadd.s32 1, %s17
    $region7: #{tpu_custom_call.1} parent=1 // loop_footer_branch
      %16 = sbr.rel target = $region3
    $region8: #{tpu_custom_call.1} parent=1 // loop_exit
      _
    %311 = vsyncpa [#allocation3], 1
    %s312 = scalar_lea.sflag [#allocation3], 1
    %313 = vsyncpa %s312, 1
    %314 = vsyncpa [#allocation6], 1
    %s315 = scalar_lea.sflag [#allocation6], 1
    %316 = vsyncpa %s315, 1
    %317 = vsyncpa [#allocation4], 1
    %s318 = scalar_lea.sflag [#allocation4], 1
    %319 = vsyncpa %s318, 1

</llo_original>
